<compile_context>
chip_gen: v6e
topology: v6e:2x2x1
jax: 0.10.0
libtpu: 0.0.40
codegen_flags: <defaults>
</compile_context>

<pallas_src>
import jax
import jax.numpy as jnp
from jax.experimental import pallas as pl
from jax.experimental.pallas import tpu as pltpu


# ----------------------------- pooling kernel ------------------------------ #

def _make_pool_kernel(hw_total, hw_tile, ragged):
    def pool_kernel(x_ref, sum_ref, max_ref):
        j = pl.program_id(1)                       # HW-tile index (reduction axis)
        x = x_ref[...].astype(jnp.float32)         # (R_BLK, HW_TILE), upcast per tile

        if ragged:
            col = jax.lax.broadcasted_iota(jnp.int32, x.shape, 1)
            valid = (j * hw_tile + col) < hw_total
            x_sum = jnp.where(valid, x, 0.0)
            x_max = jnp.where(valid, x, -jnp.inf)
        else:
            x_sum = x
            x_max = x

        tile_sum = jnp.sum(x_sum, axis=1, keepdims=True)   # (R_BLK, 1)
        tile_max = jnp.max(x_max, axis=1, keepdims=True)   # (R_BLK, 1)

        @pl.when(j == 0)
        def _():
            sum_ref[...] = tile_sum
            max_ref[...] = tile_max

        @pl.when(j > 0)
        def _():
            sum_ref[...] = sum_ref[...] + tile_sum
            max_ref[...] = jnp.maximum(max_ref[...], tile_max)

    return pool_kernel


# ----------------------------- epilogue kernel ----------------------------- #

def _make_epilogue_kernel(hw_total):
    inv_hw = 1.0 / float(hw_total)
    eps = 1e-5

    def epilogue_kernel(sum_ref, max_ref, params_ref, wf_ref, o_ref):
        # sum_ref/max_ref: (B, C) f32; params_ref: (8, C); wf_ref: (2C, C)
        B, C = sum_ref.shape

        avg = sum_ref[...] * inv_hw                      # AdaptiveAvgPool2d(1)
        mx = max_ref[...]                                # AdaptiveMaxPool2d(1)

        p = params_ref[...]
        g1, b1 = p[0:1, :], p[1:2, :]                    # bn1 (Average branch)
        g2, b2 = p[2:3, :], p[3:4, :]                    # bn2 (Max branch)
        w_m1, w_c0, w_p1 = p[4:5, :], p[5:6, :], p[6:7, :]   # k=3 conv taps (lane-bcast)

        zcol = jnp.zeros((B, 1), jnp.float32)

        def conv3(v):   # Conv1d(1,1,3,pad=1,bias=False) along the channel axis
            vm1 = jnp.concatenate([zcol, v[:, :C - 1]], axis=1)
            vp1 = jnp.concatenate([v[:, 1:], zcol], axis=1)
            return w_m1 * vm1 + w_c0 * v + w_p1 * vp1

        def bn(v, g, b):   # BatchNorm2d, training-mode batch stats (H=W=1)
            mu = jnp.mean(v, axis=0, keepdims=True)
            var = jnp.mean((v - mu) ** 2, axis=0, keepdims=True)
            return (v - mu) * jax.lax.rsqrt(var + eps) * g + b

        avg_bn = bn(conv3(avg), g1, b1)
        max_bn = bn(conv3(mx), g2, b2)

        wf = wf_ref[...]                                  # rows 0..C-1: W[:,:,0].T ; C..2C-1: W[:,:,1].T

        # Conv1d(C, C, k=2, bias=False) on cat([Max, Avg], dim=2).
        if 2 * C <= 128:
            # Tiny contraction: exact-f32 VPU broadcast-multiply-accumulate
            # (skips MXU push/drain latency and matmul precision effects).
            acc = jnp.zeros((B, C), jnp.float32)
            for ci in range(C):
                acc = acc + max_bn[:, ci:ci + 1] * wf[ci:ci + 1, :]
                acc = acc + avg_bn[:, ci:ci + 1] * wf[C + ci:C + ci + 1, :]
            out = acc
        else:
            stacked = jnp.concatenate([max_bn, avg_bn], axis=1)       # (B, 2C)
            out = jnp.dot(stacked, wf, preferred_element_type=jnp.float32)

        o_ref[...] = jax.nn.sigmoid(out)

    return epilogue_kernel


# --------------------------------- wrapper ---------------------------------- #

def _pick_row_block(rows, cap=512):
    if rows % 8 != 0:
        return rows                   # full extent (always legal)
    blk = min(rows, cap)
    blk -= blk % 8
    while rows % blk != 0:
        blk -= 8
    return blk


def _pick_hw_tile(hw, cap=1024):
    if hw <= cap:
        return hw                     # single full-extent tile
    return cap                        # multiple of 128


def channel_attention_forward(x, w3, wcc, g1, b1, g2, b2, *,
                              hw_tile=None, row_block=None):
    """x: (B, C, H, W). Returns (B, C, 1, 1) float32."""
    B, C, H, W = x.shape
    HW = H * W
    rows = B * C
    f32 = jnp.float32

    x2 = x.reshape(rows, HW)          # no dtype cast here (per-tile upcast in kernel)

    r_blk = row_block if row_block is not None else _pick_row_block(rows)
    t_hw = hw_tile if hw_tile is not None else _pick_hw_tile(HW)
    assert rows % r_blk == 0 and (r_blk == rows or r_blk % 8 == 0)
    assert t_hw == HW or t_hw % 128 == 0
    n_hw = pl.cdiv(HW, t_hw)
    ragged = (HW % t_hw) != 0

    # ---- kernel 1: tiled, pipelined global avg/max pooling ----
    pooled_sum, pooled_max = pl.pallas_call(
        _make_pool_kernel(HW, t_hw, ragged),
        out_shape=(jax.ShapeDtypeStruct((rows, 1), f32),
                   jax.ShapeDtypeStruct((rows, 1), f32)),
        grid=(rows // r_blk, n_hw),
        in_specs=[pl.BlockSpec((r_blk, t_hw), lambda i, j: (i, j))],
        out_specs=(pl.BlockSpec((r_blk, 1), lambda i, j: (i, 0)),
                   pl.BlockSpec((r_blk, 1), lambda i, j: (i, 0))),
        compiler_params=pltpu.CompilerParams(
            dimension_semantics=("parallel", "arbitrary"),
            vmem_limit_bytes=32 * 1024 * 1024),
    )(x2)

    sum_bc = pooled_sum.reshape(B, C)
    max_bc = pooled_max.reshape(B, C)

    # ---- packed parameter slabs (few, larger DMAs) ----
    w3f = w3.reshape(3).astype(f32)
    params = jnp.concatenate([
        g1.reshape(1, C).astype(f32), b1.reshape(1, C).astype(f32),
        g2.reshape(1, C).astype(f32), b2.reshape(1, C).astype(f32),
        jnp.broadcast_to(w3f[0], (1, C)), jnp.broadcast_to(w3f[1], (1, C)),
        jnp.broadcast_to(w3f[2], (1, C)), jnp.zeros((1, C), f32),
    ], axis=0)                                                    # (8, C)
    w_fused = jnp.concatenate([wcc[:, :, 0].T.astype(f32),
                               wcc[:, :, 1].T.astype(f32)], axis=0)  # (2C, C)

    # ---- kernel 2: tiny gridless epilogue ----
    vmem = pl.BlockSpec(memory_space=pltpu.MemorySpace.VMEM)
    out = pl.pallas_call(
        _make_epilogue_kernel(HW),
        out_shape=jax.ShapeDtypeStruct((B, C), f32),
        in_specs=[vmem, vmem, vmem, vmem],
        out_specs=vmem,
    )(sum_bc, max_bc, params, w_fused)

    return out.reshape(B, C, 1, 1)


# ------------------------------- pure-JAX ref -------------------------------- #

def channel_attention_reference(x, w3, wcc, g1, b1, g2, b2, eps=1e-5):
    B, C, H, W = x.shape
    xf = x.astype(jnp.float32)
    avg = xf.mean(axis=(2, 3))
    mx = xf.max(axis=(2, 3))

    def conv3(v):
        p = jnp.pad(v, ((0, 0), (1, 1)))
        return w3[0] * p[:, :C] + w3[1] * p[:, 1:C + 1] + w3[2] * p[:, 2:]

    def bn(v, g, b):
        mu = v.mean(axis=0, keepdims=True)
        var = ((v - mu) ** 2).mean(axis=0, keepdims=True)
        return (v - mu) * jax.lax.rsqrt(var + eps) * g + b

    a = bn(conv3(avg), g1, b1)
    m = bn(conv3(mx), g2, b2)
    hi = jax.lax.Precision.HIGHEST
    out = (jnp.einsum("bi,oi->bo", m, wcc[:, :, 0], precision=hi)
           + jnp.einsum("bi,oi->bo", a, wcc[:, :, 1], precision=hi))
    return jax.nn.sigmoid(out).reshape(B, C, 1, 1)


if __name__ == "__main__":
    B, C, H, W = 4, 16, 20, 20          # input_channel = 16

    key = jax.random.PRNGKey(0)
    kx, k3, kcc, kg1, kb1, kg2, kb2 = jax.random.split(key, 7)

    x = jax.random.normal(kx, (B, C, H, W), dtype=jnp.float32)

    # Synthetic parameters with shapes from the module's __init__.
    w3 = jax.random.normal(k3, (3,), dtype=jnp.float32) * 0.5          # Conv1d(1,1,3) weight
    wcc = jax.random.normal(kcc, (C, C, 2), dtype=jnp.float32) * 0.3   # Conv1d(C,C,2) weight
    g1 = 1.0 + 0.1 * jax.random.normal(kg1, (C,), dtype=jnp.float32)   # bn1 gamma
    b1 = 0.1 * jax.random.normal(kb1, (C,), dtype=jnp.float32)         # bn1 beta
    g2 = 1.0 + 0.1 * jax.random.normal(kg2, (C,), dtype=jnp.float32)   # bn2 gamma
    b2 = 0.1 * jax.random.normal(kb2, (C,), dtype=jnp.float32)         # bn2 beta

    ref = channel_attention_reference(x, w3, wcc, g1, b1, g2, b2)

    # (1) default tiling: single full-extent HW tile, single row block.
    out1 = jax.block_until_ready(channel_attention_forward(x, w3, wcc, g1, b1, g2, b2))
    # (2) forced small tiles: multi row-block (parallel axis) + multi HW tile with
    #     a ragged (masked) final tile -> exercises the accumulator path.
    out2 = jax.block_until_ready(
        channel_attention_forward(x, w3, wcc, g1, b1, g2, b2, hw_tile=128, row_block=16))

    for out in (out1, out2):
        assert out.shape == (B, C, 1, 1)
        assert jnp.allclose(out, ref, rtol=1e-4, atol=1e-4), "mismatch vs reference"

    print("KERNEL_OK")
</pallas_src>

<mosaic_0001>
module attributes {stable_mosaic.version = 11 : i64} {
  func.func @pool_kernel(%arg0: i32, %arg1: i32, %arg2: memref<64x400xf32, #tpu.memory_space<vmem>>, %arg3: memref<64x1xf32, #tpu.memory_space<vmem>>, %arg4: memref<64x1xf32, #tpu.memory_space<vmem>>) attributes {dimension_semantics = [#tpu.dimension_semantics<parallel>, #tpu.dimension_semantics<arbitrary>], iteration_bounds = array<i64: 1, 1>, scalar_prefetch = 0 : i64, scratch_operands = 0 : i64, tpu.core_type = #tpu.core_type<tc>, window_params = [{transform_indices = @transform_0, window_bounds = array<i64: 64, 400>}, {transform_indices = @transform_1, window_bounds = array<i64: 64, 1>}, {transform_indices = @transform_2, window_bounds = array<i64: 64, 1>}]} {
    %c0 = arith.constant 0 : index
    %c0_0 = arith.constant 0 : index
    %0 = vector.load %arg2[%c0, %c0_0] : memref<64x400xf32, #tpu.memory_space<vmem>>, vector<64x400xf32>
    %cst = arith.constant dense<0.000000e+00> : vector<64xf32>
    %1 = vector.multi_reduction <add>, %0, %cst [1] : vector<64x400xf32> to vector<64xf32>
    %2 = vector.shape_cast %1 : vector<64xf32> to vector<64x1xf32>
    %cst_1 = arith.constant dense<0xFF800000> : vector<64xf32>
    %3 = vector.multi_reduction <maximumf>, %0, %cst_1 [1] : vector<64x400xf32> to vector<64xf32>
    %4 = vector.shape_cast %3 : vector<64xf32> to vector<64x1xf32>
    %c0_i32 = arith.constant 0 : i32
    %5 = arith.cmpi eq, %arg1, %c0_i32 : i32
    %6 = arith.extui %5 : i1 to i32
    %c0_i32_2 = arith.constant 0 : i32
    %7 = arith.cmpi ne, %6, %c0_i32_2 : i32
    scf.if %7 {
      %c0_5 = arith.constant 0 : index
      %c0_6 = arith.constant 0 : index
      %11 = vector.load %arg3[%c0_5, %c0_6] : memref<64x1xf32, #tpu.memory_space<vmem>>, vector<64x1xf32>
      tpu.vector_store %arg3[%c0_5, %c0_6], %2 {strides = array<i32>} : memref<64x1xf32, #tpu.memory_space<vmem>>, vector<64x1xf32>,
      %c0_7 = arith.constant 0 : index
      %c0_8 = arith.constant 0 : index
      %12 = vector.load %arg4[%c0_7, %c0_8] : memref<64x1xf32, #tpu.memory_space<vmem>>, vector<64x1xf32>
      tpu.vector_store %arg4[%c0_7, %c0_8], %4 {strides = array<i32>} : memref<64x1xf32, #tpu.memory_space<vmem>>, vector<64x1xf32>,
    } else {
    }
    %c0_i32_3 = arith.constant 0 : i32
    %8 = arith.cmpi sgt, %arg1, %c0_i32_3 : i32
    %9 = arith.extui %8 : i1 to i32
    %c0_i32_4 = arith.constant 0 : i32
    %10 = arith.cmpi ne, %9, %c0_i32_4 : i32
    scf.if %10 {
      %c0_5 = arith.constant 0 : index
      %c0_6 = arith.constant 0 : index
      %11 = vector.load %arg3[%c0_5, %c0_6] : memref<64x1xf32, #tpu.memory_space<vmem>>, vector<64x1xf32>
      %12 = arith.addf %11, %2 : vector<64x1xf32>
      %c0_7 = arith.constant 0 : index
      %c0_8 = arith.constant 0 : index
      %13 = vector.load %arg3[%c0_7, %c0_8] : memref<64x1xf32, #tpu.memory_space<vmem>>, vector<64x1xf32>
      tpu.vector_store %arg3[%c0_7, %c0_8], %12 {strides = array<i32>} : memref<64x1xf32, #tpu.memory_space<vmem>>, vector<64x1xf32>,
      %c0_9 = arith.constant 0 : index
      %c0_10 = arith.constant 0 : index
      %14 = vector.load %arg4[%c0_9, %c0_10] : memref<64x1xf32, #tpu.memory_space<vmem>>, vector<64x1xf32>
      %15 = arith.maximumf %14, %4 : vector<64x1xf32>
      %c0_11 = arith.constant 0 : index
      %c0_12 = arith.constant 0 : index
      %16 = vector.load %arg4[%c0_11, %c0_12] : memref<64x1xf32, #tpu.memory_space<vmem>>, vector<64x1xf32>
      tpu.vector_store %arg4[%c0_11, %c0_12], %15 {strides = array<i32>} : memref<64x1xf32, #tpu.memory_space<vmem>>, vector<64x1xf32>,
    } else {
    }
    return
  }
  func.func @transform_0(%arg0: i32, %arg1: i32) -> (i32, i32) {
    %c0_i32 = arith.constant 0 : i32
    return %arg0, %arg1 : i32, i32
  }
  func.func @transform_1(%arg0: i32, %arg1: i32) -> (i32, i32) {
    %c0_i32 = arith.constant 0 : i32
    %c0_i32_0 = arith.constant 0 : i32
    return %arg0, %c0_i32 : i32, i32
  }
  func.func @transform_2(%arg0: i32, %arg1: i32) -> (i32, i32) {
    %c0_i32 = arith.constant 0 : i32
    %c0_i32_0 = arith.constant 0 : i32
    return %arg0, %c0_i32 : i32, i32
  }
}

</mosaic_0001>

<llo_original>
// kernel: tpu_custom_call.1
$region0: #{tpu_custom_call.1}
  #allocation0 [shape = 'u32[]', space=smem, size = 0x4, offset = 0x4, fixed_abs, tag = 'smem constant byte address 0x4 - core index']
  #allocation1 [shape = 'u32[144,128]{1,0:T(1,128)}', space=vmem, size = 0x12000, scoped, tag = 'internal scratch']
  %s0 = inlined_call_operand.hbm [shape: f32[64,400], index: 0, kind: input, shape index: {}]
  %s1 = inlined_call_operand.vmem [shape: f32[64,1], index: 1, kind: output, shape index: {0}]
  %s2 = inlined_call_operand.vmem [shape: f32[64,1], index: 2, kind: output, shape index: {1}]
  %3 = xla_tuple %s1, %s2
  %s4 = sld [smem:[#allocation0]]
  $region34: #{tpu_custom_call.1} parent=0
    _
  %s6 = ssub.s32 1, %s4
  %s7 = scalar_select 0, %s6, %s4
  $region1: #{tpu_custom_call.1} parent=0
    #allocation2 [shape = 'u8[131072]{0}', space=vmem, size = 0x20000, scoped, tag = 'input window, operand 0, single buffered']
    #allocation3 [shape = 's32[1]{0}', space=sflag, size = 0x4, scoped, tag = 'scoped memory for tpu_custom_call.1']
    %8 = vsyncpa [#allocation3], 0
    // Predicated region
    $region2: #{tpu_custom_call.1} parent=1 // pred_check
      _
    $region3: #{tpu_custom_call.1} parent=1 // pred_check_branch
      %10 = sbr.rel (0) target = $region5
    $region4: #{tpu_custom_call.1} parent=1 // pred_region
      %s12 = ssub.s32 4096, 4096
      %13 = vsyncadd [#allocation3], %s12
      %s14 = sshll.u32 [#allocation2], 4
      %s15 = int_to_ptr.vmem [resolvable:$true] %s14
      %20 = dma.hbm_to_vmem [thread:$0]  %s0, 4096, %s15, [#allocation3], 512, 512, 32
    $region5: #{tpu_custom_call.1} parent=1 // pred_fallthru
      _
    // Predicated region
    $region6: #{tpu_custom_call.1} parent=1 // pred_check
      _
    $region7: #{tpu_custom_call.1} parent=1 // pred_check_branch
      %22 = sbr.rel (0) target = $region9
    $region8: #{tpu_custom_call.1} parent=1 // pred_region
      %23 = dma.done [#allocation3], 4096
    $region9: #{tpu_custom_call.1} parent=1 // pred_fallthru
      _
    %v24 = vld [vmem:[#allocation2] sm:$0xff]
    %v25 = vld [vmem:[#allocation2 + $0x8] sm:$0xff]
    %v26 = vld [vmem:[#allocation2 + $0x10] sm:$0xff]
    %v27 = vld [vmem:[#allocation2 + $0x18] sm:$0xff]
    %v28 = vld [vmem:[#allocation2 + $0x20] sm:$0xff]
    %v29 = vld [vmem:[#allocation2 + $0x28] sm:$0xff]
    %v30 = vld [vmem:[#allocation2 + $0x30] sm:$0xff]
    %v31 = vld [vmem:[#allocation2 + $0x38] sm:$0xff]
    %v32 = vld [vmem:[#allocation2 + $0x40] sm:$0xff]
    %v33 = vld [vmem:[#allocation2 + $0x48] sm:$0xff]
    %v34 = vld [vmem:[#allocation2 + $0x50] sm:$0xff]
    %v35 = vld [vmem:[#allocation2 + $0x58] sm:$0xff]
    %v36 = vld [vmem:[#allocation2 + $0x60] sm:$0xff]
    %v37 = vld [vmem:[#allocation2 + $0x68] sm:$0xff]
    %v38 = vld [vmem:[#allocation2 + $0x70] sm:$0xff]
    %v39 = vld [vmem:[#allocation2 + $0x78] sm:$0xff]
    %v40 = vld [vmem:[#allocation2 + $0x80] sm:$0xff]
    %v41 = vld [vmem:[#allocation2 + $0x88] sm:$0xff]
    %v42 = vld [vmem:[#allocation2 + $0x90] sm:$0xff]
    %v43 = vld [vmem:[#allocation2 + $0x98] sm:$0xff]
    %v44 = vld [vmem:[#allocation2 + $0xa0] sm:$0xff]
    %v45 = vld [vmem:[#allocation2 + $0xa8] sm:$0xff]
    %v46 = vld [vmem:[#allocation2 + $0xb0] sm:$0xff]
    %v47 = vld [vmem:[#allocation2 + $0xb8] sm:$0xff]
    %v48 = vld [vmem:[#allocation2 + $0xc0] sm:$0xff]
    %v49 = vld [vmem:[#allocation2 + $0xc8] sm:$0xff]
    %v50 = vld [vmem:[#allocation2 + $0xd0] sm:$0xff]
    %v51 = vld [vmem:[#allocation2 + $0xd8] sm:$0xff]
    %v52 = vld [vmem:[#allocation2 + $0xe0] sm:$0xff]
    %v53 = vld [vmem:[#allocation2 + $0xe8] sm:$0xff]
    %v54 = vld [vmem:[#allocation2 + $0xf0] sm:$0xff]
    %v55 = vld [vmem:[#allocation2 + $0xf8] sm:$0xff]
    %v56 = vadd.f32 %v24, %v25
    %v57 = vadd.f32 %v56, %v26
    %vm58 = vcmask 130048
    %v59 = vsel %vm58, %v27, 0.0
    %v60 = vadd.f32 %v57, %v59
    %61 = vadd.xlane.f32.xlu0 %v60
    %v62 = vpop.xlane.xlu0 %61
    %v63 = vadd.f32 %v28, %v29
    %v64 = vadd.f32 %v63, %v30
    %v65 = vsel %vm58, %v31, 0.0
    %v66 = vadd.f32 %v64, %v65
    %67 = vadd.xlane.f32.xlu0 %v66
    %v68 = vpop.xlane.xlu0 %67
    %v69 = vadd.f32 %v32, %v33
    %v70 = vadd.f32 %v69, %v34
    %v71 = vsel %vm58, %v35, 0.0
    %v72 = vadd.f32 %v70, %v71
    %73 = vadd.xlane.f32.xlu0 %v72
    %v74 = vpop.xlane.xlu0 %73
    %v75 = vadd.f32 %v36, %v37
    %v76 = vadd.f32 %v75, %v38
    %v77 = vsel %vm58, %v39, 0.0
    %v78 = vadd.f32 %v76, %v77
    %79 = vadd.xlane.f32.xlu0 %v78
    %v80 = vpop.xlane.xlu0 %79
    %v81 = vadd.f32 %v40, %v41
    %v82 = vadd.f32 %v81, %v42
    %v83 = vsel %vm58, %v43, 0.0
    %v84 = vadd.f32 %v82, %v83
    %85 = vadd.xlane.f32.xlu0 %v84
    %v86 = vpop.xlane.xlu0 %85
    %v87 = vadd.f32 %v44, %v45
    %v88 = vadd.f32 %v87, %v46
    %v89 = vsel %vm58, %v47, 0.0
    %v90 = vadd.f32 %v88, %v89
    %91 = vadd.xlane.f32.xlu0 %v90
    %v92 = vpop.xlane.xlu0 %91
    %v93 = vadd.f32 %v48, %v49
    %v94 = vadd.f32 %v93, %v50
    %v95 = vsel %vm58, %v51, 0.0
    %v96 = vadd.f32 %v94, %v95
    %97 = vadd.xlane.f32.xlu0 %v96
    %v98 = vpop.xlane.xlu0 %97
    %v99 = vadd.f32 %v52, %v53
    %v100 = vadd.f32 %v99, %v54
    %v101 = vsel %vm58, %v55, 0.0
    %v102 = vadd.f32 %v100, %v101
    %103 = vadd.xlane.f32.xlu0 %v102
    %v104 = vpop.xlane.xlu0 %103
    %v105 = vmax.f32 %v24, %v25
    %v106 = vmax.f32 %v105, %v26
    %v107 = vsel %vm58, %v27, -inf
    %v108 = vmax.f32 %v106, %v107
    %109 = vmax.xlane.f32.xlu0 %v108
    %v110 = vpop.xlane.xlu0 %109
    %v111 = vmax.f32 %v28, %v29
    %v112 = vmax.f32 %v111, %v30
    %v113 = vsel %vm58, %v31, -inf
    %v114 = vmax.f32 %v112, %v113
    %115 = vmax.xlane.f32.xlu0 %v114
    %v116 = vpop.xlane.xlu0 %115
    %v117 = vmax.f32 %v32, %v33
    %v118 = vmax.f32 %v117, %v34
    %v119 = vsel %vm58, %v35, -inf
    %v120 = vmax.f32 %v118, %v119
    %121 = vmax.xlane.f32.xlu0 %v120
    %v122 = vpop.xlane.xlu0 %121
    %v123 = vmax.f32 %v36, %v37
    %v124 = vmax.f32 %v123, %v38
    %v125 = vsel %vm58, %v39, -inf
    %v126 = vmax.f32 %v124, %v125
    %127 = vmax.xlane.f32.xlu0 %v126
    %v128 = vpop.xlane.xlu0 %127
    %v129 = vmax.f32 %v40, %v41
    %v130 = vmax.f32 %v129, %v42
    %v131 = vsel %vm58, %v43, -inf
    %v132 = vmax.f32 %v130, %v131
    %133 = vmax.xlane.f32.xlu0 %v132
    %v134 = vpop.xlane.xlu0 %133
    %v135 = vmax.f32 %v44, %v45
    %v136 = vmax.f32 %v135, %v46
    %v137 = vsel %vm58, %v47, -inf
    %v138 = vmax.f32 %v136, %v137
    %139 = vmax.xlane.f32.xlu0 %v138
    %v140 = vpop.xlane.xlu0 %139
    %v141 = vmax.f32 %v48, %v49
    %v142 = vmax.f32 %v141, %v50
    %v143 = vsel %vm58, %v51, -inf
    %v144 = vmax.f32 %v142, %v143
    %145 = vmax.xlane.f32.xlu0 %v144
    %v146 = vpop.xlane.xlu0 %145
    %v147 = vmax.f32 %v52, %v53
    %v148 = vmax.f32 %v147, %v54
    %v149 = vsel %vm58, %v55, -inf
    %v150 = vmax.f32 %v148, %v149
    %151 = vmax.xlane.f32.xlu0 %v150
    %v152 = vpop.xlane.xlu0 %151
    %p153 = scmp.eq.s32.totalorder 0, 0
    // Predicated region
    $region10: #{tpu_custom_call.1} parent=1 // pred_check
      %p154 = pneg %p153
    $region11: #{tpu_custom_call.1} parent=1 // pred_check_branch
      %156 = sbr.rel (%p154) target = $region13
    $region12: #{tpu_custom_call.1} parent=1 // pred_region
      %vm157 = vcmask 7168
      %158 = vst.msk [vmem:[%s1] sm:$0xff] %vm157, %v62
      %159 = vst.msk [vmem:[%s1 + $0x8] sm:$0xff] %vm157, %v68
      %160 = vst.msk [vmem:[%s1 + $0x10] sm:$0xff] %vm157, %v74
      %161 = vst.msk [vmem:[%s1 + $0x18] sm:$0xff] %vm157, %v80
      %162 = vst.msk [vmem:[%s1 + $0x20] sm:$0xff] %vm157, %v86
      %163 = vst.msk [vmem:[%s1 + $0x28] sm:$0xff] %vm157, %v92
      %164 = vst.msk [vmem:[%s1 + $0x30] sm:$0xff] %vm157, %v98
      %165 = vst.msk [vmem:[%s1 + $0x38] sm:$0xff] %vm157, %v104
      %166 = vst.msk [vmem:[%s2] sm:$0xff] %vm157, %v110
      %167 = vst.msk [vmem:[%s2 + $0x8] sm:$0xff] %vm157, %v116
      %168 = vst.msk [vmem:[%s2 + $0x10] sm:$0xff] %vm157, %v122
      %169 = vst.msk [vmem:[%s2 + $0x18] sm:$0xff] %vm157, %v128
      %170 = vst.msk [vmem:[%s2 + $0x20] sm:$0xff] %vm157, %v134
      %171 = vst.msk [vmem:[%s2 + $0x28] sm:$0xff] %vm157, %v140
      %172 = vst.msk [vmem:[%s2 + $0x30] sm:$0xff] %vm157, %v146
      %173 = vst.msk [vmem:[%s2 + $0x38] sm:$0xff] %vm157, %v152
    $region13: #{tpu_custom_call.1} parent=1 // pred_fallthru
      _
    %p174 = scmp.gt.s32.totalorder 0, 0
    // Predicated region
    $region14: #{tpu_custom_call.1} parent=1 // pred_check
      %p175 = pneg %p174
    $region15: #{tpu_custom_call.1} parent=1 // pred_check_branch
      %177 = sbr.rel (%p175) target = $region17
    $region16: #{tpu_custom_call.1} parent=1 // pred_region
      %v178 = vld [vmem:[%s1] sm:$0xff]
      %v179 = vld [vmem:[%s1 + $0x8] sm:$0xff]
      %v180 = vld [vmem:[%s1 + $0x10] sm:$0xff]
      %v181 = vld [vmem:[%s1 + $0x18] sm:$0xff]
      %v182 = vld [vmem:[%s1 + $0x20] sm:$0xff]
      %v183 = vld [vmem:[%s1 + $0x28] sm:$0xff]
      %v184 = vld [vmem:[%s1 + $0x30] sm:$0xff]
      %v185 = vld [vmem:[%s1 + $0x38] sm:$0xff]
      %v186 = vadd.f32 %v178, %v62
      %v187 = vadd.f32 %v179, %v68
      %v188 = vadd.f32 %v180, %v74
      %v189 = vadd.f32 %v181, %v80
      %v190 = vadd.f32 %v182, %v86
      %v191 = vadd.f32 %v183, %v92
      %v192 = vadd.f32 %v184, %v98
      %v193 = vadd.f32 %v185, %v104
      %vm194 = vcmask 7168
      %195 = vst.msk [vmem:[%s1] sm:$0xff] %vm194, %v186
      %196 = vst.msk [vmem:[%s1 + $0x8] sm:$0xff] %vm194, %v187
      %197 = vst.msk [vmem:[%s1 + $0x10] sm:$0xff] %vm194, %v188
      %198 = vst.msk [vmem:[%s1 + $0x18] sm:$0xff] %vm194, %v189
      %199 = vst.msk [vmem:[%s1 + $0x20] sm:$0xff] %vm194, %v190
      %200 = vst.msk [vmem:[%s1 + $0x28] sm:$0xff] %vm194, %v191
      %201 = vst.msk [vmem:[%s1 + $0x30] sm:$0xff] %vm194, %v192
      %202 = vst.msk [vmem:[%s1 + $0x38] sm:$0xff] %vm194, %v193
      %v203 = vld [vmem:[%s2] sm:$0xff]
      %v204 = vld [vmem:[%s2 + $0x8] sm:$0xff]
      %v205 = vld [vmem:[%s2 + $0x10] sm:$0xff]
      %v206 = vld [vmem:[%s2 + $0x18] sm:$0xff]
      %v207 = vld [vmem:[%s2 + $0x20] sm:$0xff]
      %v208 = vld [vmem:[%s2 + $0x28] sm:$0xff]
      %v209 = vld [vmem:[%s2 + $0x30] sm:$0xff]
      %v210 = vld [vmem:[%s2 + $0x38] sm:$0xff]
      %v211 = vmax.f32 %v203, %v110
      %v212 = vmax.f32 %v204, %v116
      %v213 = vmax.f32 %v205, %v122
      %v214 = vmax.f32 %v206, %v128
      %v215 = vmax.f32 %v207, %v134
      %v216 = vmax.f32 %v208, %v140
      %v217 = vmax.f32 %v209, %v146
      %v218 = vmax.f32 %v210, %v152
      %219 = vst.msk [vmem:[%s2] sm:$0xff] %vm194, %v211
      %220 = vst.msk [vmem:[%s2 + $0x8] sm:$0xff] %vm194, %v212
      %221 = vst.msk [vmem:[%s2 + $0x10] sm:$0xff] %vm194, %v213
      %222 = vst.msk [vmem:[%s2 + $0x18] sm:$0xff] %vm194, %v214
      %223 = vst.msk [vmem:[%s2 + $0x20] sm:$0xff] %vm194, %v215
      %224 = vst.msk [vmem:[%s2 + $0x28] sm:$0xff] %vm194, %v216
      %225 = vst.msk [vmem:[%s2 + $0x30] sm:$0xff] %vm194, %v217
      %226 = vst.msk [vmem:[%s2 + $0x38] sm:$0xff] %vm194, %v218
    $region17: #{tpu_custom_call.1} parent=1 // pred_fallthru
      _
    // Predicated region
    $region18: #{tpu_custom_call.1} parent=1 // pred_check
      _
    $region19: #{tpu_custom_call.1} parent=1 // pred_check_branch
      %228 = sbr.rel (0) target = $region21
    $region20: #{tpu_custom_call.1} parent=1 // pred_region
      _
    $region21: #{tpu_custom_call.1} parent=1 // pred_fallthru
      _
    // Predicated region
    $region22: #{tpu_custom_call.1} parent=1 // pred_check
      _
    $region23: #{tpu_custom_call.1} parent=1 // pred_check_branch
      %230 = sbr.rel (0) target = $region25
    $region24: #{tpu_custom_call.1} parent=1 // pred_region
      _
    $region25: #{tpu_custom_call.1} parent=1 // pred_fallthru
      _
    // Predicated region
    $region26: #{tpu_custom_call.1} parent=1 // pred_check
      _
    $region27: #{tpu_custom_call.1} parent=1 // pred_check_branch
      %232 = sbr.rel (0) target = $region29
    $region28: #{tpu_custom_call.1} parent=1 // pred_region
      _
    $region29: #{tpu_custom_call.1} parent=1 // pred_fallthru
      _
    // Predicated region
    $region30: #{tpu_custom_call.1} parent=1 // pred_check
      _
    $region31: #{tpu_custom_call.1} parent=1 // pred_check_branch
      %234 = sbr.rel (0) target = $region33
    $region32: #{tpu_custom_call.1} parent=1 // pred_region
      _
    $region33: #{tpu_custom_call.1} parent=1 // pred_fallthru
      _
    %235 = vsyncpa [#allocation3], 1

</llo_original>
